<compile_context>
chip_gen: v7x
topology: tpu7x:2x2x1
jax: 0.10.0
libtpu: 0.0.40
codegen_flags: <defaults>
</compile_context>

<pallas_src>
import functools

import jax
import jax.numpy as jnp
from jax.experimental import pallas as pl
from jax.experimental.pallas import tpu as pltpu

LANE = 128     # lane width of a vreg (last dim)
SUBLANE = 8    # f32 sublane tile (second-to-last dim)


def _round_up(n, m):
    return ((n + m - 1) // m) * m


def _pad2d(a, rows, cols):
    return jnp.pad(a, ((0, rows - a.shape[0]), (0, cols - a.shape[1])))


def _vmem_capacity_bytes():
    """Physical VMEM per TensorCore; conservative fallback if query fails."""
    try:
        info = pltpu.get_tpu_info()
        cap = getattr(info, "vmem_capacity_bytes", None)
        if cap:
            return int(cap)
    except Exception:
        pass
    return 64 << 20  # assume the smallest (v7x) if unknown


def _resident_spec(shape):
    """VMEM-resident block (constant index_map) with single buffering."""
    try:
        return pl.BlockSpec(shape, lambda i: (0, 0), pipeline_mode=pl.Buffered(1))
    except TypeError:  # older BlockSpec signature without pipeline_mode
        return pl.BlockSpec(shape, lambda i: (0, 0))


def mlp_kernel(x_ref,
               w1_ref, b1_ref,
               w2_ref, b2_ref,
               w3_ref, b3_ref,
               w4_ref, b4_ref,
               o_ref):
    """Fused 4x (Linear -> ReLU) on one batch tile. All refs are VMEM tiles."""

    def layer(h, w_ref, b_ref):
        # bf16 x bf16 -> f32 accumulate on the MXU; bias + ReLU in f32 on the VPU.
        y = jnp.dot(h.astype(w_ref.dtype), w_ref[...],
                    preferred_element_type=jnp.float32)
        return jnp.maximum(y + b_ref[...], 0.0)

    h = x_ref[...]
    h = layer(h, w1_ref, b1_ref)
    h = layer(h, w2_ref, b2_ref)
    h = layer(h, w3_ref, b3_ref)
    h = layer(h, w4_ref, b4_ref)
    o_ref[...] = h.astype(o_ref.dtype)


@functools.partial(jax.jit, static_argnames=("out_features", "tile_b"))
def mlp_forward(x, padded_params, *, out_features, tile_b=256):
    """x: [B, input_nums] f32. padded_params: 4x (W_bf16 padded, b_f32 padded)."""
    (w1, b1), (w2, b2), (w3, b3), (w4, b4) = padded_params
    B, _ = x.shape
    in_p = w1.shape[0]
    out_p = w4.shape[1]
    out_f = out_features

    # --- batch tiling: keep tiles a multiple of 8 sublanes; when the whole
    # batch fits in <= 2 tiles, split it so grid_b >= 2 whenever possible
    # (lets the "parallel" axis shard across v7x's two TensorCores). ---
    tile_b = _round_up(max(int(tile_b), SUBLANE), SUBLANE)
    b_al = _round_up(B, SUBLANE)
    if b_al <= 2 * tile_b:
        tb = _round_up((b_al + 1) // 2, SUBLANE)
    else:
        tb = tile_b
    tb = max(tb, SUBLANE)
    b_pad = _round_up(b_al, tb)
    grid_b = b_pad // tb

    # Pad x only when needed (static-shape check; no-op op when aligned).
    if x.shape != (b_pad, in_p):
        x_p = _pad2d(x, b_pad, in_p)
    else:
        x_p = x

    # --- VMEM budget (counted once; weights are bf16 and single-buffered). ---
    w_itemsize = jnp.dtype(w1.dtype).itemsize
    weight_bytes = sum(int(w.size) * w_itemsize for w in (w1, w2, w3, w4))
    bias_bytes = sum(int(b.size) * 4 for b in (b1, b2, b3, b4))
    max_feat = max(in_p, w1.shape[1], w2.shape[1], w3.shape[1], out_p)
    act_bytes = 2 * tb * in_p * 4 + 2 * tb * out_p * 4     # double-buffered x / out tiles
    interm_bytes = 3 * tb * max_feat * 4                    # live f32 intermediates
    need = int((weight_bytes + bias_bytes + act_bytes + interm_bytes) * 3 // 2)

    phys = _vmem_capacity_bytes()
    if phys <= (64 << 20):                 # v7x: leave headroom under 64 MiB physical
        cap = 56 << 20
    else:                                  # v5e/v6e: 128 MiB physical
        cap = min(phys - (16 << 20), 112 << 20)
    vmem_limit = int(min(max(32 << 20, need), cap))

    # --- cost estimate for XLA's scheduler (advisory). ---
    layer_dims = ((in_p, w1.shape[1]),
                  (w1.shape[1], w2.shape[1]),
                  (w2.shape[1], w3.shape[1]),
                  (w3.shape[1], out_p))
    flops = int(2 * b_pad * sum(k * n for k, n in layer_dims))
    bytes_accessed = int(b_pad * in_p * 4 + b_pad * out_p * 4
                         + weight_bytes + bias_bytes)
    cost = pl.CostEstimate(flops=flops, transcendentals=0,
                           bytes_accessed=bytes_accessed)

    out_padded = pl.pallas_call(
        mlp_kernel,
        out_shape=jax.ShapeDtypeStruct((b_pad, out_p), jnp.float32),
        grid_spec=pltpu.PrefetchScalarGridSpec(
            num_scalar_prefetch=0,
            grid=(grid_b,),
            in_specs=[
                pl.BlockSpec((tb, in_p), lambda i: (i, 0)),   # x: streamed per batch tile
                _resident_spec(w1.shape), _resident_spec(b1.shape),
                _resident_spec(w2.shape), _resident_spec(b2.shape),
                _resident_spec(w3.shape), _resident_spec(b3.shape),
                _resident_spec(w4.shape), _resident_spec(b4.shape),
            ],
            out_specs=pl.BlockSpec((tb, out_p), lambda i: (i, 0)),  # lane-dense store
        ),
        compiler_params=pltpu.CompilerParams(
            dimension_semantics=("parallel",),
            vmem_limit_bytes=vmem_limit,
        ),
        cost_estimate=cost,
    )(x_p, w1, b1, w2, b2, w3, b3, w4, b4)

    if (b_pad, out_p) != (B, out_f):
        return out_padded[:B, :out_f]
    return out_padded


def init_params(key, input_nums, output_nums):
    """Deterministic f32 init mirroring the PyTorch module's layer shapes.

    Weights are stored as (in, out) == PyTorch W.T; biases as (1, out)."""
    h1 = int(input_nums * 1.2)
    dims = [(input_nums, h1),
            (h1, input_nums),
            (input_nums, input_nums),
            (input_nums, output_nums)]
    params = []
    for (fan_in, fan_out) in dims:
        key, kw, kb = jax.random.split(key, 3)
        bound = 1.0 / jnp.sqrt(fan_in)
        w = jax.random.uniform(kw, (fan_in, fan_out), jnp.float32, -bound, bound)
        b = jax.random.uniform(kb, (1, fan_out), jnp.float32, -bound, bound)
        params.append((w, b))
    return params


def prepare_params(params, weight_dtype=jnp.bfloat16):
    """One-time (outside the per-call forward): pad every weight/bias to
    lane-multiples with zeros and cast weights to the MXU-native dtype.
    Biases stay f32 (bias-add + ReLU run in f32 on the VPU)."""
    # TODO(synk): optional fp8 weight quantization (per-output-channel scales)
    # for v7x inference is not implemented; bf16 is the default fast path.
    padded = []
    for (w, b) in params:
        in_p = _round_up(w.shape[0], LANE)
        out_p = _round_up(w.shape[1], LANE)
        w_p = _pad2d(w, in_p, out_p).astype(weight_dtype)
        b_p = _pad2d(b, 1, out_p).astype(jnp.float32)
        padded.append((w_p, b_p))
    return padded


def mlp_reference(x, params):
    h = x
    for (w, b) in params:
        h = jnp.maximum(h @ w + b, 0.0)
    return h


if __name__ == "__main__":
    input_nums = 64
    output_nums = 32
    batch = 4

    key = jax.random.PRNGKey(0)
    key, kx = jax.random.split(key)
    x = jax.random.normal(kx, (batch, input_nums), jnp.float32)

    params = init_params(key, input_nums, output_nums)           # logical f32 params
    padded_params = prepare_params(params)                       # padded + bf16, once

    out = mlp_forward(x, padded_params, out_features=output_nums)
    out = jax.block_until_ready(out)

    ref = mlp_reference(x, params)
    assert out.shape == (batch, output_nums), out.shape
    # bf16 MXU path vs f32 reference: relaxed tolerance.
    err = float(jnp.max(jnp.abs(out - ref)))
    assert jnp.allclose(out, ref, atol=5e-2, rtol=5e-2), err

    print("KERNEL_OK")
</pallas_src>

<mosaic_0001>
module attributes {stable_mosaic.version = 11 : i64} {
  func.func @mlp_kernel(%arg0: i32, %arg1: memref<8x128xf32, #tpu.memory_space<vmem>>, %arg2: memref<128x128xbf16, #tpu.memory_space<vmem>>, %arg3: memref<1x128xf32, #tpu.memory_space<vmem>>, %arg4: memref<128x128xbf16, #tpu.memory_space<vmem>>, %arg5: memref<1x128xf32, #tpu.memory_space<vmem>>, %arg6: memref<128x128xbf16, #tpu.memory_space<vmem>>, %arg7: memref<1x128xf32, #tpu.memory_space<vmem>>, %arg8: memref<128x128xbf16, #tpu.memory_space<vmem>>, %arg9: memref<1x128xf32, #tpu.memory_space<vmem>>, %arg10: memref<8x128xf32, #tpu.memory_space<vmem>>) attributes {dimension_semantics = [#tpu.dimension_semantics<parallel>], iteration_bounds = array<i64: 1>, scalar_prefetch = 0 : i64, scratch_operands = 0 : i64, tpu.core_type = #tpu.core_type<tc>, window_params = [{transform_indices = @transform_0, window_bounds = array<i64: 8, 128>}, {pipeline_mode = #tpu.pipeline_mode<synchronous>, transform_indices = @transform_1, window_bounds = array<i64: 128, 128>}, {pipeline_mode = #tpu.pipeline_mode<synchronous>, transform_indices = @transform_2, window_bounds = array<i64: 1, 128>}, {pipeline_mode = #tpu.pipeline_mode<synchronous>, transform_indices = @transform_3, window_bounds = array<i64: 128, 128>}, {pipeline_mode = #tpu.pipeline_mode<synchronous>, transform_indices = @transform_4, window_bounds = array<i64: 1, 128>}, {pipeline_mode = #tpu.pipeline_mode<synchronous>, transform_indices = @transform_5, window_bounds = array<i64: 128, 128>}, {pipeline_mode = #tpu.pipeline_mode<synchronous>, transform_indices = @transform_6, window_bounds = array<i64: 1, 128>}, {pipeline_mode = #tpu.pipeline_mode<synchronous>, transform_indices = @transform_7, window_bounds = array<i64: 128, 128>}, {pipeline_mode = #tpu.pipeline_mode<synchronous>, transform_indices = @transform_8, window_bounds = array<i64: 1, 128>}, {transform_indices = @transform_9, window_bounds = array<i64: 8, 128>}]} {
    %c0 = arith.constant 0 : index
    %c0_0 = arith.constant 0 : index
    %0 = vector.load %arg1[%c0, %c0_0] : memref<8x128xf32, #tpu.memory_space<vmem>>, vector<8x128xf32>
    %1 = arith.truncf %0 : vector<8x128xf32> to vector<8x128xbf16>
    %c0_1 = arith.constant 0 : index
    %c0_2 = arith.constant 0 : index
    %2 = vector.load %arg2[%c0_1, %c0_2] : memref<128x128xbf16, #tpu.memory_space<vmem>>, vector<128x128xbf16>
    %cst = arith.constant dense<0.000000e+00> : vector<8x128xf32>
    %3 = tpu.matmul %1, %2, %cst {dimension_numbers = #tpu.dot_dimension_numbers<[1], [0], [0], [1], [0, 0, 1, 1], [], []>} : vector<8x128xbf16>, vector<128x128xbf16>, vector<8x128xf32> -> vector<8x128xf32>
    %c0_3 = arith.constant 0 : index
    %c0_4 = arith.constant 0 : index
    %4 = vector.load %arg3[%c0_3, %c0_4] : memref<1x128xf32, #tpu.memory_space<vmem>>, vector<1x128xf32>
    %5 = vector.broadcast %4 : vector<1x128xf32> to vector<8x128xf32>
    %6 = arith.addf %3, %5 : vector<8x128xf32>
    %cst_5 = arith.constant 0.000000e+00 : f32
    %7 = vector.broadcast %cst_5 : f32 to vector<8x128xf32>
    %8 = arith.maximumf %6, %7 : vector<8x128xf32>
    %9 = arith.truncf %8 : vector<8x128xf32> to vector<8x128xbf16>
    %c0_6 = arith.constant 0 : index
    %c0_7 = arith.constant 0 : index
    %10 = vector.load %arg4[%c0_6, %c0_7] : memref<128x128xbf16, #tpu.memory_space<vmem>>, vector<128x128xbf16>
    %cst_8 = arith.constant dense<0.000000e+00> : vector<8x128xf32>
    %11 = tpu.matmul %9, %10, %cst_8 {dimension_numbers = #tpu.dot_dimension_numbers<[1], [0], [0], [1], [0, 0, 1, 1], [], []>} : vector<8x128xbf16>, vector<128x128xbf16>, vector<8x128xf32> -> vector<8x128xf32>
    %c0_9 = arith.constant 0 : index
    %c0_10 = arith.constant 0 : index
    %12 = vector.load %arg5[%c0_9, %c0_10] : memref<1x128xf32, #tpu.memory_space<vmem>>, vector<1x128xf32>
    %13 = vector.broadcast %12 : vector<1x128xf32> to vector<8x128xf32>
    %14 = arith.addf %11, %13 : vector<8x128xf32>
    %cst_11 = arith.constant 0.000000e+00 : f32
    %15 = vector.broadcast %cst_11 : f32 to vector<8x128xf32>
    %16 = arith.maximumf %14, %15 : vector<8x128xf32>
    %17 = arith.truncf %16 : vector<8x128xf32> to vector<8x128xbf16>
    %c0_12 = arith.constant 0 : index
    %c0_13 = arith.constant 0 : index
    %18 = vector.load %arg6[%c0_12, %c0_13] : memref<128x128xbf16, #tpu.memory_space<vmem>>, vector<128x128xbf16>
    %cst_14 = arith.constant dense<0.000000e+00> : vector<8x128xf32>
    %19 = tpu.matmul %17, %18, %cst_14 {dimension_numbers = #tpu.dot_dimension_numbers<[1], [0], [0], [1], [0, 0, 1, 1], [], []>} : vector<8x128xbf16>, vector<128x128xbf16>, vector<8x128xf32> -> vector<8x128xf32>
    %c0_15 = arith.constant 0 : index
    %c0_16 = arith.constant 0 : index
    %20 = vector.load %arg7[%c0_15, %c0_16] : memref<1x128xf32, #tpu.memory_space<vmem>>, vector<1x128xf32>
    %21 = vector.broadcast %20 : vector<1x128xf32> to vector<8x128xf32>
    %22 = arith.addf %19, %21 : vector<8x128xf32>
    %cst_17 = arith.constant 0.000000e+00 : f32
    %23 = vector.broadcast %cst_17 : f32 to vector<8x128xf32>
    %24 = arith.maximumf %22, %23 : vector<8x128xf32>
    %25 = arith.truncf %24 : vector<8x128xf32> to vector<8x128xbf16>
    %c0_18 = arith.constant 0 : index
    %c0_19 = arith.constant 0 : index
    %26 = vector.load %arg8[%c0_18, %c0_19] : memref<128x128xbf16, #tpu.memory_space<vmem>>, vector<128x128xbf16>
    %cst_20 = arith.constant dense<0.000000e+00> : vector<8x128xf32>
    %27 = tpu.matmul %25, %26, %cst_20 {dimension_numbers = #tpu.dot_dimension_numbers<[1], [0], [0], [1], [0, 0, 1, 1], [], []>} : vector<8x128xbf16>, vector<128x128xbf16>, vector<8x128xf32> -> vector<8x128xf32>
    %c0_21 = arith.constant 0 : index
    %c0_22 = arith.constant 0 : index
    %28 = vector.load %arg9[%c0_21, %c0_22] : memref<1x128xf32, #tpu.memory_space<vmem>>, vector<1x128xf32>
    %29 = vector.broadcast %28 : vector<1x128xf32> to vector<8x128xf32>
    %30 = arith.addf %27, %29 : vector<8x128xf32>
    %cst_23 = arith.constant 0.000000e+00 : f32
    %31 = vector.broadcast %cst_23 : f32 to vector<8x128xf32>
    %32 = arith.maximumf %30, %31 : vector<8x128xf32>
    %c0_24 = arith.constant 0 : index
    %c0_25 = arith.constant 0 : index
    %33 = vector.load %arg10[%c0_24, %c0_25] : memref<8x128xf32, #tpu.memory_space<vmem>>, vector<8x128xf32>
    tpu.vector_store %arg10[%c0_24, %c0_25], %32 {strides = array<i32>} : memref<8x128xf32, #tpu.memory_space<vmem>>, vector<8x128xf32>,
    return
  }
  func.func @transform_0(%arg0: i32) -> (i32, i32) {
    %c0_i32 = arith.constant 0 : i32
    %c0_i32_0 = arith.constant 0 : i32
    return %arg0, %c0_i32 : i32, i32
  }
  func.func @transform_1(%arg0: i32) -> (i32, i32) {
    %c0_i32 = arith.constant 0 : i32
    %c0_i32_0 = arith.constant 0 : i32
    %c0_i32_1 = arith.constant 0 : i32
    return %c0_i32, %c0_i32_0 : i32, i32
  }
  func.func @transform_2(%arg0: i32) -> (i32, i32) {
    %c0_i32 = arith.constant 0 : i32
    %c0_i32_0 = arith.constant 0 : i32
    %c0_i32_1 = arith.constant 0 : i32
    return %c0_i32, %c0_i32_0 : i32, i32
  }
  func.func @transform_3(%arg0: i32) -> (i32, i32) {
    %c0_i32 = arith.constant 0 : i32
    %c0_i32_0 = arith.constant 0 : i32
    %c0_i32_1 = arith.constant 0 : i32
    return %c0_i32, %c0_i32_0 : i32, i32
  }
  func.func @transform_4(%arg0: i32) -> (i32, i32) {
    %c0_i32 = arith.constant 0 : i32
    %c0_i32_0 = arith.constant 0 : i32
    %c0_i32_1 = arith.constant 0 : i32
    return %c0_i32, %c0_i32_0 : i32, i32
  }
  func.func @transform_5(%arg0: i32) -> (i32, i32) {
    %c0_i32 = arith.constant 0 : i32
    %c0_i32_0 = arith.constant 0 : i32
    %c0_i32_1 = arith.constant 0 : i32
    return %c0_i32, %c0_i32_0 : i32, i32
  }
  func.func @transform_6(%arg0: i32) -> (i32, i32) {
    %c0_i32 = arith.constant 0 : i32
    %c0_i32_0 = arith.constant 0 : i32
    %c0_i32_1 = arith.constant 0 : i32
    return %c0_i32, %c0_i32_0 : i32, i32
  }
  func.func @transform_7(%arg0: i32) -> (i32, i32) {
    %c0_i32 = arith.constant 0 : i32
    %c0_i32_0 = arith.constant 0 : i32
    %c0_i32_1 = arith.constant 0 : i32
    return %c0_i32, %c0_i32_0 : i32, i32
  }
  func.func @transform_8(%arg0: i32) -> (i32, i32) {
    %c0_i32 = arith.constant 0 : i32
    %c0_i32_0 = arith.constant 0 : i32
    %c0_i32_1 = arith.constant 0 : i32
    return %c0_i32, %c0_i32_0 : i32, i32
  }
  func.func @transform_9(%arg0: i32) -> (i32, i32) {
    %c0_i32 = arith.constant 0 : i32
    %c0_i32_0 = arith.constant 0 : i32
    return %arg0, %c0_i32 : i32, i32
  }
}

</mosaic_0001>

<llo_original>
// kernel: mlp_forward.1
$region0: #{mlp_forward.1}
  #allocation0 [shape = 'u32[]', space=smem, size = 0x4, offset = 0x4, fixed_abs, tag = 'smem constant byte address 0x4 - core index']
  #allocation1 [shape = 'u32[144,128]{1,0:T(1,128)}', space=vmem, size = 0x12000, scoped, tag = 'internal scratch']
  %s0 = inlined_call_operand.vmem [shape: f32[8,128], index: 0, kind: input, shape index: {}]
  %s1 = inlined_call_operand.hbm [shape: bf16[128,128], index: 1, kind: input, shape index: {}]
  %s2 = inlined_call_operand.vmem [shape: f32[1,128], index: 2, kind: input, shape index: {}]
  %s3 = inlined_call_operand.hbm [shape: bf16[128,128], index: 3, kind: input, shape index: {}]
  %s4 = inlined_call_operand.vmem [shape: f32[1,128], index: 4, kind: input, shape index: {}]
  %s5 = inlined_call_operand.hbm [shape: bf16[128,128], index: 5, kind: input, shape index: {}]
  %s6 = inlined_call_operand.vmem [shape: f32[1,128], index: 6, kind: input, shape index: {}]
  %s7 = inlined_call_operand.hbm [shape: bf16[128,128], index: 7, kind: input, shape index: {}]
  %s8 = inlined_call_operand.vmem [shape: f32[1,128], index: 8, kind: input, shape index: {}]
  %s9 = inlined_call_operand.vmem [shape: f32[8,128], index: 9, kind: output, shape index: {}]
  %s10 = sld [smem:[#allocation0]]
  $region62: #{mlp_forward.1} parent=0
    _
  %s12 = ssub.s32 1, %s10
  %s13 = scalar_select 0, %s12, %s10
  $region1: #{mlp_forward.1} parent=0
    #allocation2 [shape = 'u8[32768]{0}', space=vmem, size = 0x8000, scoped, tag = 'input window, operand 1, single buffered']
    #allocation3 [shape = 's32[1]{0}', space=sflag, size = 0x4, scoped, tag = 'scoped memory for mlp_forward.1']
    #allocation4 [shape = 'u8[32768]{0}', space=vmem, size = 0x8000, scoped, tag = 'input window, operand 3, single buffered']
    #allocation5 [shape = 's32[1]{0}', space=sflag, size = 0x4, scoped, tag = 'scoped memory for mlp_forward.1']
    #allocation6 [shape = 'u8[32768]{0}', space=vmem, size = 0x8000, scoped, tag = 'input window, operand 5, single buffered']
    #allocation7 [shape = 'u8[32768]{0}', space=vmem, size = 0x8000, scoped, tag = 'input window, operand 7, single buffered']
    #allocation8 [shape = 's32[1]{0}', space=sflag, size = 0x4, scoped, tag = 'scoped memory for mlp_forward.1']
    %14 = vsyncpa [#allocation3], 0
    %15 = vsyncpa [#allocation5], 0
    %16 = vsyncpa [#allocation8], 0
    // Predicated region
    $region2: #{mlp_forward.1} parent=1 // pred_check
      _
    $region3: #{mlp_forward.1} parent=1 // pred_check_branch
      %18 = sbr.rel (0) target = $region5
    $region4: #{mlp_forward.1} parent=1 // pred_region
      _
    $region5: #{mlp_forward.1} parent=1 // pred_fallthru
      _
    // Predicated region
    $region6: #{mlp_forward.1} parent=1 // pred_check
      _
    $region7: #{mlp_forward.1} parent=1 // pred_check_branch
      %20 = sbr.rel (0) target = $region9
    $region8: #{mlp_forward.1} parent=1 // pred_region
      %s22 = ssub.s32 1024, 1024
      %23 = vsyncadd [#allocation3], %s22
      %s24 = sshll.u32 [#allocation2], 4
      %s25 = int_to_ptr.vmem [resolvable:$true] %s24
      %30 = dma.hbm_to_vmem [thread:$0]  %s1, 1024, %s25, [#allocation3], 64, 64, 4
    $region9: #{mlp_forward.1} parent=1 // pred_fallthru
      _
    // Predicated region
    $region10: #{mlp_forward.1} parent=1 // pred_check
      _
    $region11: #{mlp_forward.1} parent=1 // pred_check_branch
      %32 = sbr.rel (0) target = $region13
    $region12: #{mlp_forward.1} parent=1 // pred_region
      _
    $region13: #{mlp_forward.1} parent=1 // pred_fallthru
      _
    // Predicated region
    $region14: #{mlp_forward.1} parent=1 // pred_check
      _
    $region15: #{mlp_forward.1} parent=1 // pred_check_branch
      %34 = sbr.rel (0) target = $region17
    $region16: #{mlp_forward.1} parent=1 // pred_region
      %s36 = ssub.s32 1024, 1024
      %37 = vsyncadd [#allocation5], %s36
      %s38 = sshll.u32 [#allocation4], 4
      %s39 = int_to_ptr.vmem [resolvable:$true] %s38
      %44 = dma.hbm_to_vmem [thread:$0]  %s3, 1024, %s39, [#allocation5], 64, 64, 4
    $region17: #{mlp_forward.1} parent=1 // pred_fallthru
      _
    // Predicated region
    $region18: #{mlp_forward.1} parent=1 // pred_check
      _
    $region19: #{mlp_forward.1} parent=1 // pred_check_branch
      %46 = sbr.rel (0) target = $region21
    $region20: #{mlp_forward.1} parent=1 // pred_region
      _
    $region21: #{mlp_forward.1} parent=1 // pred_fallthru
      _
    // Predicated region
    $region22: #{mlp_forward.1} parent=1 // pred_check
      _
    $region23: #{mlp_forward.1} parent=1 // pred_check_branch
      %48 = sbr.rel (0) target = $region25
    $region24: #{mlp_forward.1} parent=1 // pred_region
      %s50 = ssub.s32 1024, 1024
      %51 = vsyncadd [#allocation5], %s50
      %s52 = sshll.u32 [#allocation6], 4
      %s53 = int_to_ptr.vmem [resolvable:$true] %s52
      %58 = dma.hbm_to_vmem [thread:$0]  %s5, 1024, %s53, [#allocation5], 64, 64, 4
    $region25: #{mlp_forward.1} parent=1 // pred_fallthru
      _
    // Predicated region
    $region26: #{mlp_forward.1} parent=1 // pred_check
      _
    $region27: #{mlp_forward.1} parent=1 // pred_check_branch
      %60 = sbr.rel (0) target = $region29
    $region28: #{mlp_forward.1} parent=1 // pred_region
      _
    $region29: #{mlp_forward.1} parent=1 // pred_fallthru
      _
    // Predicated region
    $region30: #{mlp_forward.1} parent=1 // pred_check
      _
    $region31: #{mlp_forward.1} parent=1 // pred_check_branch
      %62 = sbr.rel (0) target = $region33
    $region32: #{mlp_forward.1} parent=1 // pred_region
      %s64 = ssub.s32 1024, 1024
      %65 = vsyncadd [#allocation8], %s64
      %s66 = sshll.u32 [#allocation7], 4
      %s67 = int_to_ptr.vmem [resolvable:$true] %s66
      %72 = dma.hbm_to_vmem [thread:$0]  %s7, 1024, %s67, [#allocation8], 64, 64, 4
    $region33: #{mlp_forward.1} parent=1 // pred_fallthru
      _
    // Predicated region
    $region34: #{mlp_forward.1} parent=1 // pred_check
      _
    $region35: #{mlp_forward.1} parent=1 // pred_check_branch
      %74 = sbr.rel (0) target = $region37
    $region36: #{mlp_forward.1} parent=1 // pred_region
      _
    $region37: #{mlp_forward.1} parent=1 // pred_fallthru
      _
    // Predicated region
    $region38: #{mlp_forward.1} parent=1 // pred_check
      _
    $region39: #{mlp_forward.1} parent=1 // pred_check_branch
      %76 = sbr.rel (0) target = $region41
    $region40: #{mlp_forward.1} parent=1 // pred_region
      %77 = dma.done [#allocation3], 1024
    $region41: #{mlp_forward.1} parent=1 // pred_fallthru
      _
    // Predicated region
    $region42: #{mlp_forward.1} parent=1 // pred_check
      _
    $region43: #{mlp_forward.1} parent=1 // pred_check_branch
      %79 = sbr.rel (0) target = $region45
    $region44: #{mlp_forward.1} parent=1 // pred_region
      %80 = dma.done [#allocation5], 1024
    $region45: #{mlp_forward.1} parent=1 // pred_fallthru
      _
    // Predicated region
    $region46: #{mlp_forward.1} parent=1 // pred_check
      _
    $region47: #{mlp_forward.1} parent=1 // pred_check_branch
      %82 = sbr.rel (0) target = $region49
    $region48: #{mlp_forward.1} parent=1 // pred_region
      %83 = dma.done [#allocation5], 1024
    $region49: #{mlp_forward.1} parent=1 // pred_fallthru
      _
    // Predicated region
    $region50: #{mlp_forward.1} parent=1 // pred_check
      _
    $region51: #{mlp_forward.1} parent=1 // pred_check_branch
      %85 = sbr.rel (0) target = $region53
    $region52: #{mlp_forward.1} parent=1 // pred_region
      %86 = dma.done [#allocation8], 1024
    $region53: #{mlp_forward.1} parent=1 // pred_fallthru
      _
    %v88 = vld [vmem:[%s0] sm:$0xff]
    %v89 = vpack.c.bf16 %v88, %v88
    %v90 = vld [vmem:[#allocation2] sm:$0xf]
    %v91 = vld [vmem:[#allocation2 + $0x4] sm:$0xf]
    %v92 = vld [vmem:[#allocation2 + $0x8] sm:$0xf]
    %v93 = vld [vmem:[#allocation2 + $0xc] sm:$0xf]
    %v94 = vld [vmem:[#allocation2 + $0x10] sm:$0xf]
    %v95 = vld [vmem:[#allocation2 + $0x14] sm:$0xf]
    %v96 = vld [vmem:[#allocation2 + $0x18] sm:$0xf]
    %v97 = vld [vmem:[#allocation2 + $0x1c] sm:$0xf]
    %v98 = vld [vmem:[#allocation2 + $0x20] sm:$0xf]
    %v99 = vld [vmem:[#allocation2 + $0x24] sm:$0xf]
    %v100 = vld [vmem:[#allocation2 + $0x28] sm:$0xf]
    %v101 = vld [vmem:[#allocation2 + $0x2c] sm:$0xf]
    %v102 = vld [vmem:[#allocation2 + $0x30] sm:$0xf]
    %v103 = vld [vmem:[#allocation2 + $0x34] sm:$0xf]
    %v104 = vld [vmem:[#allocation2 + $0x38] sm:$0xf]
    %v105 = vld [vmem:[#allocation2 + $0x3c] sm:$0xf]
    %v106 = vld [vmem:[%s2] sm:$0x1]
    %v108 = vlaneseq
    %v109 = vshrl.u32 %v108, 7
    %v110 = vsub.s32 0, %v109
    %v111 = vrot.slane %v106, %v110
    %v129 = vunpack.c.l.b16 %v90
    %v130 = vunpack.c.l.b16 %v91
    %v131 = vunpack.c.l.b16 %v92
    %v132 = vunpack.c.l.b16 %v93
    %v133 = vunpack.c.l.b16 %v94
    %v134 = vunpack.c.l.b16 %v95
    %v135 = vunpack.c.l.b16 %v96
    %v136 = vunpack.c.l.b16 %v97
    %v137 = vunpack.c.l.b16 %v98
    %v138 = vunpack.c.l.b16 %v99
    %v139 = vunpack.c.l.b16 %v100
    %v140 = vunpack.c.l.b16 %v101
    %v141 = vunpack.c.l.b16 %v102
    %v142 = vunpack.c.l.b16 %v103
    %v143 = vunpack.c.l.b16 %v104
    %v144 = vunpack.c.l.b16 %v105
    %v145 = vpack.c.b16 %v130, %v129
    %v146 = vpack.c.b16 %v132, %v131
    %v147 = vpack.c.b16 %v134, %v133
    %v148 = vpack.c.b16 %v136, %v135
    %v149 = vpack.c.b16 %v138, %v137
    %v150 = vpack.c.b16 %v140, %v139
    %v151 = vpack.c.b16 %v142, %v141
    %v152 = vpack.c.b16 %v144, %v143
    %161 = vmatprep.subr.bf16.mxu0 0
    %162 = vmatpush1.bf16.msra.mxu0 %v145
    %163 = vmatprep.subr.bf16.mxu0 0
    %164 = vmatpush1.bf16.msra.mxu0 %v146
    %165 = vmatprep.subr.bf16.mxu0 0
    %166 = vmatpush1.bf16.msra.mxu0 %v147
    %167 = vmatprep.subr.bf16.mxu0 0
    %168 = vmatpush1.bf16.msra.mxu0 %v148
    %169 = vmatprep.subr.bf16.mxu0 0
    %170 = vmatpush1.bf16.msra.mxu0 %v149
    %171 = vmatprep.subr.bf16.mxu0 0
    %172 = vmatpush1.bf16.msra.mxu0 %v150
    %173 = vmatprep.subr.bf16.mxu0 0
    %174 = vmatpush1.bf16.msra.mxu0 %v151
    %175 = vmatprep.subr.bf16.mxu0 0
    %176 = vmatpush1.bf16.msra.mxu0 %v152
    %177 = vmatprep.subr.bf16.mxu0 0
    %178 = vmatpush1.bf16.msra.mxu0 0
    %179 = vmatprep.subr.bf16.mxu0 0
    %180 = vmatpush1.bf16.msra.mxu0 0
    %181 = vmatprep.subr.bf16.mxu0 0
    %182 = vmatpush1.bf16.msra.mxu0 0
    %183 = vmatprep.subr.bf16.mxu0 0
    %184 = vmatpush1.bf16.msra.mxu0 0
    %185 = vmatprep.subr.bf16.mxu0 0
    %186 = vmatpush1.bf16.msra.mxu0 0
    %187 = vmatprep.subr.bf16.mxu0 0
    %188 = vmatpush1.bf16.msra.mxu0 0
    %189 = vmatprep.subr.bf16.mxu0 0
    %190 = vmatpush1.bf16.msra.mxu0 0
    %191 = vmatprep.subr.bf16.mxu0 0
    %192 = vmatpush1.bf16.msra.mxu0 0
    %193 = vmatprep.mubr.bf16.mxu0 0
    %194 = vmatmul.mubr.bf16.gmra.mrb[0].mxu0 %v89
    %v195 = vpop.f32.mrb[0].mxu0
    %v196 = vadd.f32 %v111, %v195
    %v197 = vpop.f32.mrb[0].mxu0
    %v198 = vpop.f32.mrb[0].mxu0
    %v199 = vpop.f32.mrb[0].mxu0
    %200 = vdwg.mxu0
    %v201 = vmax.f32 %v196, 0.0
    %v202 = vpack.c.bf16 %v201, %v201
    %v203 = vld [vmem:[#allocation4] sm:$0xf]
    %v204 = vld [vmem:[#allocation4 + $0x4] sm:$0xf]
    %v205 = vld [vmem:[#allocation4 + $0x8] sm:$0xf]
    %v206 = vld [vmem:[#allocation4 + $0xc] sm:$0xf]
    %v207 = vld [vmem:[#allocation4 + $0x10] sm:$0xf]
    %v208 = vld [vmem:[#allocation4 + $0x14] sm:$0xf]
    %v209 = vld [vmem:[#allocation4 + $0x18] sm:$0xf]
    %v210 = vld [vmem:[#allocation4 + $0x1c] sm:$0xf]
    %v211 = vld [vmem:[#allocation4 + $0x20] sm:$0xf]
    %v212 = vld [vmem:[#allocation4 + $0x24] sm:$0xf]
    %v213 = vld [vmem:[#allocation4 + $0x28] sm:$0xf]
    %v214 = vld [vmem:[#allocation4 + $0x2c] sm:$0xf]
    %v215 = vld [vmem:[#allocation4 + $0x30] sm:$0xf]
    %v216 = vld [vmem:[#allocation4 + $0x34] sm:$0xf]
    %v217 = vld [vmem:[#allocation4 + $0x38] sm:$0xf]
    %v218 = vld [vmem:[#allocation4 + $0x3c] sm:$0xf]
    %v219 = vld [vmem:[%s4] sm:$0x1]
    %v221 = vlaneseq
    %v222 = vshrl.u32 %v221, 7
    %v223 = vsub.s32 0, %v222
    %v224 = vrot.slane %v219, %v223
    %v242 = vunpack.c.l.b16 %v203
    %v243 = vunpack.c.l.b16 %v204
    %v244 = vunpack.c.l.b16 %v205
    %v245 = vunpack.c.l.b16 %v206
    %v246 = vunpack.c.l.b16 %v207
    %v247 = vunpack.c.l.b16 %v208
    %v248 = vunpack.c.l.b16 %v209
    %v249 = vunpack.c.l.b16 %v210
    %v250 = vunpack.c.l.b16 %v211
    %v251 = vunpack.c.l.b16 %v212
    %v252 = vunpack.c.l.b16 %v213
    %v253 = vunpack.c.l.b16 %v214
    %v254 = vunpack.c.l.b16 %v215
    %v255 = vunpack.c.l.b16 %v216
    %v256 = vunpack.c.l.b16 %v217
    %v257 = vunpack.c.l.b16 %v218
    %v258 = vpack.c.b16 %v243, %v242
    %v259 = vpack.c.b16 %v245, %v244
    %v260 = vpack.c.b16 %v247, %v246
    %v261 = vpack.c.b16 %v249, %v248
    %v262 = vpack.c.b16 %v251, %v250
    %v263 = vpack.c.b16 %v253, %v252
    %v264 = vpack.c.b16 %v255, %v254
    %v265 = vpack.c.b16 %v257, %v256
    %274 = vmatprep.subr.bf16.mxu0 0
    %275 = vmatpush1.bf16.msra.mxu0 %v258
    %276 = vmatprep.subr.bf16.mxu0 0
    %277 = vmatpush1.bf16.msra.mxu0 %v259
    %278 = vmatprep.subr.bf16.mxu0 0
    %279 = vmatpush1.bf16.msra.mxu0 %v260
    %280 = vmatprep.subr.bf16.mxu0 0
    %281 = vmatpush1.bf16.msra.mxu0 %v261
    %282 = vmatprep.subr.bf16.mxu0 0
    %283 = vmatpush1.bf16.msra.mxu0 %v262
    %284 = vmatprep.subr.bf16.mxu0 0
    %285 = vmatpush1.bf16.msra.mxu0 %v263
    %286 = vmatprep.subr.bf16.mxu0 0
    %287 = vmatpush1.bf16.msra.mxu0 %v264
    %288 = vmatprep.subr.bf16.mxu0 0
    %289 = vmatpush1.bf16.msra.mxu0 %v265
    %290 = vmatprep.subr.bf16.mxu0 0
    %291 = vmatpush1.bf16.msra.mxu0 0
    %292 = vmatprep.subr.bf16.mxu0 0
    %293 = vmatpush1.bf16.msra.mxu0 0
    %294 = vmatprep.subr.bf16.mxu0 0
    %295 = vmatpush1.bf16.msra.mxu0 0
    %296 = vmatprep.subr.bf16.mxu0 0
    %297 = vmatpush1.bf16.msra.mxu0 0
    %298 = vmatprep.subr.bf16.mxu0 0
    %299 = vmatpush1.bf16.msra.mxu0 0
    %300 = vmatprep.subr.bf16.mxu0 0
    %301 = vmatpush1.bf16.msra.mxu0 0
    %302 = vmatprep.subr.bf16.mxu0 0
    %303 = vmatpush1.bf16.msra.mxu0 0
    %304 = vmatprep.subr.bf16.mxu0 0
    %305 = vmatpush1.bf16.msra.mxu0 0
    %306 = vmatprep.mubr.bf16.mxu0 0
    %307 = vmatmul.mubr.bf16.gmra.mrb[0].mxu0 %v202
    %v308 = vpop.f32.mrb[0].mxu0
    %v309 = vadd.f32 %v224, %v308
    %v310 = vpop.f32.mrb[0].mxu0
    %v311 = vpop.f32.mrb[0].mxu0
    %v312 = vpop.f32.mrb[0].mxu0
    %313 = vdwg.mxu0
    %v314 = vmax.f32 %v309, 0.0
    %v315 = vpack.c.bf16 %v314, %v314
    %v316 = vld [vmem:[#allocation6] sm:$0xf]
    %v317 = vld [vmem:[#allocation6 + $0x4] sm:$0xf]
    %v318 = vld [vmem:[#allocation6 + $0x8] sm:$0xf]
    %v319 = vld [vmem:[#allocation6 + $0xc] sm:$0xf]
    %v320 = vld [vmem:[#allocation6 + $0x10] sm:$0xf]
    %v321 = vld [vmem:[#allocation6 + $0x14] sm:$0xf]
    %v322 = vld [vmem:[#allocation6 + $0x18] sm:$0xf]
    %v323 = vld [vmem:[#allocation6 + $0x1c] sm:$0xf]
    %v324 = vld [vmem:[#allocation6 + $0x20] sm:$0xf]
    %v325 = vld [vmem:[#allocation6 + $0x24] sm:$0xf]
    %v326 = vld [vmem:[#allocation6 + $0x28] sm:$0xf]
    %v327 = vld [vmem:[#allocation6 + $0x2c] sm:$0xf]
    %v328 = vld [vmem:[#allocation6 + $0x30] sm:$0xf]
    %v329 = vld [vmem:[#allocation6 + $0x34] sm:$0xf]
    %v330 = vld [vmem:[#allocation6 + $0x38] sm:$0xf]
    %v331 = vld [vmem:[#allocation6 + $0x3c] sm:$0xf]
    %v332 = vld [vmem:[%s6] sm:$0x1]
    %v334 = vlaneseq
    %v335 = vshrl.u32 %v334, 7
    %v336 = vsub.s32 0, %v335
    %v337 = vrot.slane %v332, %v336
    %v355 = vunpack.c.l.b16 %v316
    %v356 = vunpack.c.l.b16 %v317
    %v357 = vunpack.c.l.b16 %v318
    %v358 = vunpack.c.l.b16 %v319
    %v359 = vunpack.c.l.b16 %v320
    %v360 = vunpack.c.l.b16 %v321
    %v361 = vunpack.c.l.b16 %v322
    %v362 = vunpack.c.l.b16 %v323
    %v363 = vunpack.c.l.b16 %v324
    %v364 = vunpack.c.l.b16 %v325
    %v365 = vunpack.c.l.b16 %v326
    %v366 = vunpack.c.l.b16 %v327
    %v367 = vunpack.c.l.b16 %v328
    %v368 = vunpack.c.l.b16 %v329
    %v369 = vunpack.c.l.b16 %v330
    %v370 = vunpack.c.l.b16 %v331
    %v371 = vpack.c.b16 %v356, %v355
    %v372 = vpack.c.b16 %v358, %v357
    %v373 = vpack.c.b16 %v360, %v359
    %v374 = vpack.c.b16 %v362, %v361
    %v375 = vpack.c.b16 %v364, %v363
    %v376 = vpack.c.b16 %v366, %v365
    %v377 = vpack.c.b16 %v368, %v367
    %v378 = vpack.c.b16 %v370, %v369
    %387 = vmatprep.subr.bf16.mxu0 0
    %388 = vmatpush1.bf16.msra.mxu0 %v371
    %389 = vmatprep.subr.bf16.mxu0 0
    %390 = vmatpush1.bf16.msra.mxu0 %v372
    %391 = vmatprep.subr.bf16.mxu0 0
    %392 = vmatpush1.bf16.msra.mxu0 %v373
    %393 = vmatprep.subr.bf16.mxu0 0
    %394 = vmatpush1.bf16.msra.mxu0 %v374
    %395 = vmatprep.subr.bf16.mxu0 0
    %396 = vmatpush1.bf16.msra.mxu0 %v375
    %397 = vmatprep.subr.bf16.mxu0 0
    %398 = vmatpush1.bf16.msra.mxu0 %v376
    %399 = vmatprep.subr.bf16.mxu0 0
    %400 = vmatpush1.bf16.msra.mxu0 %v377
    %401 = vmatprep.subr.bf16.mxu0 0
    %402 = vmatpush1.bf16.msra.mxu0 %v378
    %403 = vmatprep.subr.bf16.mxu0 0
    %404 = vmatpush1.bf16.msra.mxu0 0
    %405 = vmatprep.subr.bf16.mxu0 0
    %406 = vmatpush1.bf16.msra.mxu0 0
    %407 = vmatprep.subr.bf16.mxu0 0
    %408 = vmatpush1.bf16.msra.mxu0 0
    %409 = vmatprep.subr.bf16.mxu0 0
    %410 = vmatpush1.bf16.msra.mxu0 0
    %411 = vmatprep.subr.bf16.mxu0 0
    %412 = vmatpush1.bf16.msra.mxu0 0
    %413 = vmatprep.subr.bf16.mxu0 0
    %414 = vmatpush1.bf16.msra.mxu0 0
    %415 = vmatprep.subr.bf16.mxu0 0
    %416 = vmatpush1.bf16.msra.mxu0 0
    %417 = vmatprep.subr.bf16.mxu0 0
    %418 = vmatpush1.bf16.msra.mxu0 0
    %419 = vmatprep.mubr.bf16.mxu0 0
    %420 = vmatmul.mubr.bf16.gmra.mrb[0].mxu0 %v315
    %v421 = vpop.f32.mrb[0].mxu0
    %v422 = vadd.f32 %v337, %v421
    %v423 = vpop.f32.mrb[0].mxu0
    %v424 = vpop.f32.mrb[0].mxu0
    %v425 = vpop.f32.mrb[0].mxu0
    %426 = vdwg.mxu0
    %v427 = vmax.f32 %v422, 0.0
    %v428 = vpack.c.bf16 %v427, %v427
    %v429 = vld [vmem:[#allocation7] sm:$0xf]
    %v430 = vld [vmem:[#allocation7 + $0x4] sm:$0xf]
    %v431 = vld [vmem:[#allocation7 + $0x8] sm:$0xf]
    %v432 = vld [vmem:[#allocation7 + $0xc] sm:$0xf]
    %v433 = vld [vmem:[#allocation7 + $0x10] sm:$0xf]
    %v434 = vld [vmem:[#allocation7 + $0x14] sm:$0xf]
    %v435 = vld [vmem:[#allocation7 + $0x18] sm:$0xf]
    %v436 = vld [vmem:[#allocation7 + $0x1c] sm:$0xf]
    %v437 = vld [vmem:[#allocation7 + $0x20] sm:$0xf]
    %v438 = vld [vmem:[#allocation7 + $0x24] sm:$0xf]
    %v439 = vld [vmem:[#allocation7 + $0x28] sm:$0xf]
    %v440 = vld [vmem:[#allocation7 + $0x2c] sm:$0xf]
    %v441 = vld [vmem:[#allocation7 + $0x30] sm:$0xf]
    %v442 = vld [vmem:[#allocation7 + $0x34] sm:$0xf]
    %v443 = vld [vmem:[#allocation7 + $0x38] sm:$0xf]
    %v444 = vld [vmem:[#allocation7 + $0x3c] sm:$0xf]
    %v445 = vld [vmem:[%s8] sm:$0x1]
    %v447 = vlaneseq
    %v448 = vshrl.u32 %v447, 7
    %v449 = vsub.s32 0, %v448
    %v450 = vrot.slane %v445, %v449
    %v468 = vunpack.c.l.b16 %v429
    %v469 = vunpack.c.l.b16 %v430
    %v470 = vunpack.c.l.b16 %v431
    %v471 = vunpack.c.l.b16 %v432
    %v472 = vunpack.c.l.b16 %v433
    %v473 = vunpack.c.l.b16 %v434
    %v474 = vunpack.c.l.b16 %v435
    %v475 = vunpack.c.l.b16 %v436
    %v476 = vunpack.c.l.b16 %v437
    %v477 = vunpack.c.l.b16 %v438
    %v478 = vunpack.c.l.b16 %v439
    %v479 = vunpack.c.l.b16 %v440
    %v480 = vunpack.c.l.b16 %v441
    %v481 = vunpack.c.l.b16 %v442
    %v482 = vunpack.c.l.b16 %v443
    %v483 = vunpack.c.l.b16 %v444
    %v484 = vpack.c.b16 %v469, %v468
    %v485 = vpack.c.b16 %v471, %v470
    %v486 = vpack.c.b16 %v473, %v472
    %v487 = vpack.c.b16 %v475, %v474
    %v488 = vpack.c.b16 %v477, %v476
    %v489 = vpack.c.b16 %v479, %v478
    %v490 = vpack.c.b16 %v481, %v480
    %v491 = vpack.c.b16 %v483, %v482
    %500 = vmatprep.subr.bf16.mxu0 0
    %501 = vmatpush1.bf16.msra.mxu0 %v484
    %502 = vmatprep.subr.bf16.mxu0 0
    %503 = vmatpush1.bf16.msra.mxu0 %v485
    %504 = vmatprep.subr.bf16.mxu0 0
    %505 = vmatpush1.bf16.msra.mxu0 %v486
    %506 = vmatprep.subr.bf16.mxu0 0
    %507 = vmatpush1.bf16.msra.mxu0 %v487
    %508 = vmatprep.subr.bf16.mxu0 0
    %509 = vmatpush1.bf16.msra.mxu0 %v488
    %510 = vmatprep.subr.bf16.mxu0 0
    %511 = vmatpush1.bf16.msra.mxu0 %v489
    %512 = vmatprep.subr.bf16.mxu0 0
    %513 = vmatpush1.bf16.msra.mxu0 %v490
    %514 = vmatprep.subr.bf16.mxu0 0
    %515 = vmatpush1.bf16.msra.mxu0 %v491
    %516 = vmatprep.subr.bf16.mxu0 0
    %517 = vmatpush1.bf16.msra.mxu0 0
    %518 = vmatprep.subr.bf16.mxu0 0
    %519 = vmatpush1.bf16.msra.mxu0 0
    %520 = vmatprep.subr.bf16.mxu0 0
    %521 = vmatpush1.bf16.msra.mxu0 0
    %522 = vmatprep.subr.bf16.mxu0 0
    %523 = vmatpush1.bf16.msra.mxu0 0
    %524 = vmatprep.subr.bf16.mxu0 0
    %525 = vmatpush1.bf16.msra.mxu0 0
    %526 = vmatprep.subr.bf16.mxu0 0
    %527 = vmatpush1.bf16.msra.mxu0 0
    %528 = vmatprep.subr.bf16.mxu0 0
    %529 = vmatpush1.bf16.msra.mxu0 0
    %530 = vmatprep.subr.bf16.mxu0 0
    %531 = vmatpush1.bf16.msra.mxu0 0
    %532 = vmatprep.mubr.bf16.mxu0 0
    %533 = vmatmul.mubr.bf16.gmra.mrb[0].mxu0 %v428
    %v534 = vpop.f32.mrb[0].mxu0
    %v535 = vadd.f32 %v450, %v534
    %v536 = vpop.f32.mrb[0].mxu0
    %v537 = vpop.f32.mrb[0].mxu0
    %v538 = vpop.f32.mrb[0].mxu0
    %539 = vdwg.mxu0
    %v540 = vmax.f32 %v535, 0.0
    %541 = vst [vmem:[%s9] sm:$0xff] %v540
    // Predicated region
    $region54: #{mlp_forward.1} parent=1 // pred_check
      _
    $region55: #{mlp_forward.1} parent=1 // pred_check_branch
      %543 = sbr.rel (0) target = $region57
    $region56: #{mlp_forward.1} parent=1 // pred_region
      _
    $region57: #{mlp_forward.1} parent=1 // pred_fallthru
      _
    // Predicated region
    $region58: #{mlp_forward.1} parent=1 // pred_check
      _
    $region59: #{mlp_forward.1} parent=1 // pred_check_branch
      %545 = sbr.rel (0) target = $region61
    $region60: #{mlp_forward.1} parent=1 // pred_region
      _
    $region61: #{mlp_forward.1} parent=1 // pred_fallthru
      _
    %546 = vsyncpa [#allocation3], 1
    %547 = vsyncpa [#allocation5], 1
    %548 = vsyncpa [#allocation8], 1

</llo_original>
